<compile_context>
chip_gen: v7x
topology: tpu7x:2x2x1
jax: 0.10.0
libtpu: 0.0.40
codegen_flags: <defaults>
</compile_context>

<pallas_src>
import functools

import jax
import jax.numpy as jnp
from jax.experimental import pallas as pl
from jax.experimental.pallas import tpu as pltpu


# ----------------------------------------------------------------------------
# Kernels
# ----------------------------------------------------------------------------
def _pooler_kernel_fused(x4_hbm, o4_hbm, sem, *, max_post_num, bt):
    """Fast path: one rectangular HBM->HBM DMA per grid step.

    x4_hbm: [B, S//L, L, H] input, left in HBM (memory_space=pl.ANY).
    o4_hbm: [B, P, 1, H]    output, left in HBM (memory_space=pl.ANY).
    sem:    scalar DMA completion semaphore.
    """
    b0 = pl.program_id(0) * bt
    src = x4_hbm.at[pl.ds(b0, bt), pl.ds(0, max_post_num), pl.ds(0, 1), :]
    dst = o4_hbm.at[pl.ds(b0, bt)]
    cp = pltpu.make_async_copy(src, dst, sem)
    cp.start()
    cp.wait()


def _pooler_kernel_per_post(x_hbm, o_hbm, sems, *, max_post_length, max_post_num, bt):
    """General path (S not divisible by L): P rectangular HBM->HBM DMAs per step.

    x_hbm:  [B, S, H] input in HBM.
    o_hbm:  [B, P, H] output in HBM.
    sems:   (P,) DMA completion semaphores.
    """
    b0 = pl.program_id(0) * bt
    copies = []
    for i in range(max_post_num):
        cp = pltpu.make_async_copy(
            x_hbm.at[pl.ds(b0, bt), pl.ds(i * max_post_length, 1), :],
            o_hbm.at[pl.ds(b0, bt), pl.ds(i, 1), :],
            sems.at[i],
        )
        cp.start()
        copies.append(cp)
    for cp in copies:
        cp.wait()


# ----------------------------------------------------------------------------
# Wrapper
# ----------------------------------------------------------------------------
def bert_hierarchy_pooler(hidden_states, max_post_length, max_post_num):
    """hidden_states: [B, S, H] -> [B, max_post_num, H] (first token of each post)."""
    B, S, H = hidden_states.shape
    # The manual DMA has no runtime bounds check -> guard statically.
    # (max_post_length / max_post_num are required to be Python ints: they
    # determine the output shape, so they can never be traced values here.)
    assert (max_post_num - 1) * max_post_length < S, (
        "post grid exceeds sequence length: "
        f"(max_post_num-1)*max_post_length={(max_post_num - 1) * max_post_length} >= S={S}"
    )

    # <= 2 grid steps: 2 (one per v7x TensorCore) when the batch splits evenly,
    # otherwise a single step.  Extra steps only add per-step overhead here.
    steps = 2 if (B >= 2 and B % 2 == 0) else 1
    bt = B // steps
    compiler_params = pltpu.CompilerParams(dimension_semantics=("parallel",))

    if S % max_post_length == 0:
        # Fast path: free metadata reshape makes the gather a rectangular sub-box,
        # so each grid step is exactly ONE DMA descriptor.
        x4 = hidden_states.reshape(B, S // max_post_length, max_post_length, H)
        out4 = pl.pallas_call(
            functools.partial(_pooler_kernel_fused, max_post_num=max_post_num, bt=bt),
            out_shape=jax.ShapeDtypeStruct((B, max_post_num, 1, H), hidden_states.dtype),
            grid=(steps,),
            in_specs=[pl.BlockSpec(memory_space=pl.ANY)],
            out_specs=pl.BlockSpec(memory_space=pl.ANY),
            scratch_shapes=[pltpu.SemaphoreType.DMA(())],
            compiler_params=compiler_params,
        )(x4)
        return out4.reshape(B, max_post_num, H)

    # General path: S not divisible by max_post_length -> per-post rectangular DMAs.
    return pl.pallas_call(
        functools.partial(
            _pooler_kernel_per_post,
            max_post_length=max_post_length,
            max_post_num=max_post_num,
            bt=bt,
        ),
        out_shape=jax.ShapeDtypeStruct((B, max_post_num, H), hidden_states.dtype),
        grid=(steps,),
        in_specs=[pl.BlockSpec(memory_space=pl.ANY)],
        out_specs=pl.BlockSpec(memory_space=pl.ANY),
        scratch_shapes=[pltpu.SemaphoreType.DMA((max_post_num,))],
        compiler_params=compiler_params,
    )(hidden_states)


# ----------------------------------------------------------------------------
# Self-test
# ----------------------------------------------------------------------------
if __name__ == "__main__":
    key = jax.random.PRNGKey(0)

    def _reference(x, L, P):
        idx = jnp.arange(P) * L
        return x[:, idx, :]

    # Case 1 (fast path): S = max_post_num * max_post_length, even batch.
    B, L, P, H = 2, 8, 4, 128
    S = L * P  # 32
    k1, k2 = jax.random.split(key)
    x1 = jax.random.normal(k1, (B, S, H), dtype=jnp.float32)
    out1 = jax.block_until_ready(bert_hierarchy_pooler(x1, L, P))
    ref1 = _reference(x1, L, P)
    assert out1.shape == (B, P, H) and out1.dtype == x1.dtype
    assert jnp.allclose(out1, ref1), "fast-path output mismatch vs reference"

    # Case 2 (general path): S not divisible by max_post_length, odd batch, bf16.
    B2, L2, P2, H2 = 3, 8, 4, 128
    S2 = L2 * P2 + 3  # 35 -> per-post DMA path
    x2 = jax.random.normal(k2, (B2, S2, H2), dtype=jnp.bfloat16)
    out2 = jax.block_until_ready(bert_hierarchy_pooler(x2, L2, P2))
    ref2 = _reference(x2, L2, P2)
    assert out2.shape == (B2, P2, H2) and out2.dtype == x2.dtype
    assert jnp.array_equal(out2, ref2), "general-path output mismatch vs reference"

    print("KERNEL_OK")
</pallas_src>

<mosaic_0001>
module attributes {stable_mosaic.version = 11 : i64} {
  func.func @_pooler_kernel_fused(%arg0: i32, %arg1: memref<2x4x8x128xf32, #tpu.memory_space<any>>, %arg2: memref<2x4x1x128xf32, #tpu.memory_space<any>>, %arg3: memref<!tpu.dma_semaphore, #tpu.memory_space<semaphore_mem>>) attributes {dimension_semantics = [#tpu.dimension_semantics<parallel>], iteration_bounds = array<i64: 2>, scalar_prefetch = 0 : i64, scratch_operands = 1 : i64, tpu.core_type = #tpu.core_type<tc>, window_params = [{}, {}]} {
    %c1_i32 = arith.constant 1 : i32
    %0 = arith.muli %arg0, %c1_i32 : i32
    %c0_i32 = arith.constant 0 : i32
    %c0_i32_0 = arith.constant 0 : i32
    %c0_i32_1 = arith.constant 0 : i32
    %1 = tpu.memref_slice %arg1[%0, %c0_i32, %c0_i32_0, %c0_i32_1] : memref<2x4x8x128xf32, #tpu.memory_space<any>> -> memref<1x4x1x128xf32, #tpu.memory_space<any>>
    %c0_i32_2 = arith.constant 0 : i32
    %c0_i32_3 = arith.constant 0 : i32
    %c0_i32_4 = arith.constant 0 : i32
    %2 = tpu.memref_slice %arg2[%0, %c0_i32_2, %c0_i32_3, %c0_i32_4] : memref<2x4x1x128xf32, #tpu.memory_space<any>> -> memref<1x4x1x128xf32, #tpu.memory_space<any>>
    tpu.enqueue_dma source(%1 : memref<1x4x1x128xf32, #tpu.memory_space<any>>) target(%2 : memref<1x4x1x128xf32, #tpu.memory_space<any>>) target_semaphore(%arg3 : memref<!tpu.dma_semaphore, #tpu.memory_space<semaphore_mem>>)
    %c0_i32_5 = arith.constant 0 : i32
    %c0_i32_6 = arith.constant 0 : i32
    %c0_i32_7 = arith.constant 0 : i32
    %3 = tpu.memref_slice %arg1[%0, %c0_i32_5, %c0_i32_6, %c0_i32_7] : memref<2x4x8x128xf32, #tpu.memory_space<any>> -> memref<1x4x1x128xf32, #tpu.memory_space<any>>
    %c0_i32_8 = arith.constant 0 : i32
    %c0_i32_9 = arith.constant 0 : i32
    %c0_i32_10 = arith.constant 0 : i32
    %4 = tpu.memref_slice %arg2[%0, %c0_i32_8, %c0_i32_9, %c0_i32_10] : memref<2x4x1x128xf32, #tpu.memory_space<any>> -> memref<1x4x1x128xf32, #tpu.memory_space<any>>
    tpu.wait_dma2 semaphore(%arg3 : memref<!tpu.dma_semaphore, #tpu.memory_space<semaphore_mem>>) src(%3 : memref<1x4x1x128xf32, #tpu.memory_space<any>>) dst(%4 : memref<1x4x1x128xf32, #tpu.memory_space<any>>)
    return
  }
}

</mosaic_0001>

<llo_original>
// kernel: tpu_custom_call.1
$region0: #{tpu_custom_call.1}
  #allocation0 [shape = 'u32[]', space=smem, size = 0x4, offset = 0x4, fixed_abs, tag = 'smem constant byte address 0x4 - core index']
  #allocation1 [shape = 'u32[144,128]{1,0:T(1,128)}', space=vmem, size = 0x12000, scoped, tag = 'internal scratch']
  #allocation2 [shape = 's32[1]{0}', space=sflag, size = 0x4, scoped, tag = 'scratch operand']
  #allocation3 [shape = 's32[]', space=sflag, size = 0x4, offset = 0, fixed_abs, tag = 'sflag constant byte address 0x0 - dummy sync flag']
  %s0 = inlined_call_operand.hbm [shape: f32[2,4,8,128], index: 0, kind: input, shape index: {}]
  %s1 = inlined_call_operand.hbm [shape: f32[2,4,1,128], index: 1, kind: output, shape index: {}]
  %s2 = sld [smem:[#allocation0]]
  $region9: #{tpu_custom_call.1} parent=0
    _
  %s4 = ssub.s32 1, %s2
  %s5 = scalar_select 0, %s4, %s2
  loop: start=0, step=1, limit=2
  $region2: #{tpu_custom_call.1} parent=0 // loop_pre_header
    _
  $region3: #{tpu_custom_call.1} parent=0 // loop_header
    %s7 = sphi 0, %s11
    %p8 = scmp.ge.s32.totalorder %s7, 2
  $region4: #{tpu_custom_call.1} parent=0 // loop_header_branch
    %10 = sbr.rel (%p8) target = $region8
  $region5: #{tpu_custom_call.1} parent=0 // loop_body
    #allocation4 [shape = 'u32[3]{0}', space=smem, size = 0xc, scoped, tag = 'DMA stride descriptor']
    %s12 = sadd.s32 %s7, 1
    %s13 = smul.u32 %s7, 32
    %s14 = smul.addr %s13, 16
    %s15 = scalar_lea.hbm %s0, %s14
    %s16 = smul.u32 %s7, 4
    %s17 = smul.addr %s16, 16
    %s18 = scalar_lea.hbm %s1, %s17
    %s20 = sshll.u32 1, 14
    %s21 = sxor.u32 4294967295, %s20
    %s24 = sshll.u32 3, 24
    %s25 = sxor.u32 4294967295, %s24
    %s26 = sand.u32 0, %s25
    %s28 = sor.u32 %s26, 0
    %31 = sst [smem:[#allocation4]] 128
    %s32 = scalar_lea.smem [#allocation4], 1
    %33 = sst [smem:[%s32]] 16
    %s34 = scalar_lea.smem [#allocation4], 2
    %35 = sst [smem:[%s34]] 1
    %37 = dma.general %s15, 64, %s18, [#allocation2], [#allocation3], [#allocation4], %s28, 0
    %s38 = smul.u32 1, 4
    %s39 = smul.u32 %s38, 1
    %s40 = smul.u32 %s39, 1
    %s41 = sshll.u32 %s40, 4
    %42 = dma.done [#allocation2], %s41
  $region6: #{tpu_custom_call.1} parent=0 // loop_footer
    %s11 = sadd.s32 1, %s7
  $region7: #{tpu_custom_call.1} parent=0 // loop_footer_branch
    %6 = sbr.rel target = $region3
  $region8: #{tpu_custom_call.1} parent=0 // loop_exit
    _
  %43 = vsyncmov [#allocation2]
  %s44 = vpop.sfrf %43
  %p45 = scmp.eq.s32.totalorder %s44, 0
  %p46 = pneg %p45
  %48 = shalt.err (%p46)

</llo_original>
